<compile_context>
chip_gen: v7x
topology: tpu7x:2x2x1
jax: 0.10.0
libtpu: 0.0.40
codegen_flags: <defaults>
</compile_context>

<pallas_src>
import math
import functools

import jax
import jax.numpy as jnp
from jax.experimental import pallas as pl
from jax.experimental.pallas import tpu as pltpu

_LANE = 128


# ----------------------------------------------------------------------------- kernel

def _csa_kernel(*refs, has_second):
    # refs (in order):
    #   xb_ref : (1, Cin,  TM)   base_feat tile
    #   xd_ref : (1, Cin,  TM)   dla_feat tile
    #  [s2_ref : (1, Cout, TM)   second_stage_feat tile]      (optional)
    #   wb_ref : (Cout, Cin)     base conv weight with BN scale folded in
    #   bb_ref : (Cout, 1)       base folded BN shift
    #   wd_ref : (Cout, Cin)     dla  conv weight with BN scale folded in
    #   bd_ref : (Cout, 1)       dla  folded BN shift
    #   o_ref  : (1, Cout, TM)
    if has_second:
        xb_ref, xd_ref, s2_ref, wb_ref, bb_ref, wd_ref, bd_ref, o_ref = refs
    else:
        xb_ref, xd_ref, wb_ref, bb_ref, wd_ref, bd_ref, o_ref = refs

    xb = xb_ref[0]                      # (Cin, TM) — lanes = spatial (dense)
    xd = xd_ref[0]

    # One MXU matmul per branch (1x1 conv == channel matmul), f32 accumulation.
    yb = jnp.dot(wb_ref[...], xb, preferred_element_type=jnp.float32) + bb_ref[...]
    yd = jnp.dot(wd_ref[...], xd, preferred_element_type=jnp.float32) + bd_ref[...]

    out = jnp.maximum(yb, 0.0) + jnp.maximum(yd, 0.0)
    if has_second:
        out = out + s2_ref[0].astype(jnp.float32)

    o_ref[0] = out.astype(o_ref.dtype)


# ----------------------------------------------------------------------------- tiling

def _choose_tm(hw_pad, n, cin, cout, has_second, itemsize):
    """Largest lane-dense spatial tile that divides hw_pad, fits a conservative
    VMEM budget, is capped at 1024, and keeps >= 2 parallel grid steps."""
    nblk = hw_pad // _LANE
    # Double-buffered per-step footprint ~ 2 * (2*Cin + [Cout s2] + Cout out) * TM * itemsize.
    chans = 2 * cin + cout + (cout if has_second else 0)
    budget = 8 << 20                                     # safe on v5e/v6e/v7x
    cap_blk = max(1, budget // (2 * chans * _LANE * itemsize))
    cap_blk = min(cap_blk, 1024 // _LANE)                # TM <= 1024
    best = 1
    for k in range(1, nblk + 1):
        if nblk % k != 0 or k > cap_blk:
            continue
        steps = n * (nblk // k)
        if steps >= 2 or n * nblk == 1:                  # keep megacore busy on v7x
            best = k
    return best * _LANE


# ----------------------------------------------------------------------------- wrapper

def cross_stage_aggregation(base_feat, dla_feat, params, second_stage_feat=None):
    """Fused CrossStageAggregation forward.  Inputs are NCHW (PyTorch layout)."""
    N, Cin, H, W = base_feat.shape
    Cout = params["w_base"].shape[0]
    HW = H * W
    dtype = base_feat.dtype
    itemsize = jnp.dtype(dtype).itemsize

    # Pad the flattened spatial axis to a multiple of 128 so every tile is
    # lane-dense (no masked vst.msk stores); padded lanes are sliced off at the end.
    HW_pad = pl.cdiv(HW, _LANE) * _LANE
    pad = HW_pad - HW

    has_second = second_stage_feat is not None
    TM = _choose_tm(HW_pad, N, Cin, Cout, has_second, itemsize)
    grid = (N, HW_pad // TM)

    def prep(x, c):
        x = x.reshape(N, c, HW)                          # contiguous reshape
        if pad:
            x = jnp.pad(x, ((0, 0), (0, 0), (0, pad)))
        return x

    xb = prep(base_feat, Cin)
    xd = prep(dla_feat, Cin)

    in_arrays = [xb, xd]
    in_specs = [
        pl.BlockSpec((1, Cin, TM), lambda n, m: (n, 0, m)),
        pl.BlockSpec((1, Cin, TM), lambda n, m: (n, 0, m)),
    ]
    if has_second:
        in_arrays.append(prep(second_stage_feat, Cout))
        in_specs.append(pl.BlockSpec((1, Cout, TM), lambda n, m: (n, 0, m)))

    in_arrays += [params["w_base"], params["b_base"],
                  params["w_dla"], params["b_dla"]]
    in_specs += [
        pl.BlockSpec((Cout, Cin), lambda n, m: (0, 0)),
        pl.BlockSpec((Cout, 1), lambda n, m: (0, 0)),
        pl.BlockSpec((Cout, Cin), lambda n, m: (0, 0)),
        pl.BlockSpec((Cout, 1), lambda n, m: (0, 0)),
    ]

    # Advisory cost hint so XLA can overlap this short, HBM-bound call.
    bytes_io = (2 * Cin + Cout + (Cout if has_second else 0)) * N * HW * itemsize
    cost = pl.CostEstimate(
        flops=4 * Cout * Cin * N * HW,
        bytes_accessed=bytes_io,
        transcendentals=0,
    )

    out = pl.pallas_call(
        functools.partial(_csa_kernel, has_second=has_second),
        out_shape=jax.ShapeDtypeStruct((N, Cout, HW_pad), dtype),
        grid=grid,
        in_specs=in_specs,
        out_specs=pl.BlockSpec((1, Cout, TM), lambda n, m: (n, 0, m)),
        compiler_params=pltpu.CompilerParams(
            dimension_semantics=("parallel", "parallel")),
        cost_estimate=cost,
    )(*in_arrays)

    if pad:
        out = out[:, :, :HW]
    return out.reshape(N, Cout, H, W)


# ----------------------------------------------------------------------------- params

def make_csa_params(key, in_channel, out_channel, eps=1e-5):
    """Conv1x1 (no bias) + BatchNorm(eval) parameters, with the BN scale folded
    directly into the conv weight and the BN shift kept as a (Cout, 1) vector."""

    def conv_bn(k):
        k1, k2, k3, k4, k5 = jax.random.split(k, 5)
        w = jax.random.normal(k1, (out_channel, in_channel), jnp.float32) \
            / math.sqrt(in_channel)
        gamma = jax.random.uniform(k2, (out_channel,), jnp.float32, 0.5, 1.5)
        beta = jax.random.normal(k3, (out_channel,), jnp.float32) * 0.1
        mean = jax.random.normal(k4, (out_channel,), jnp.float32) * 0.1
        var = jax.random.uniform(k5, (out_channel,), jnp.float32, 0.5, 1.5)
        scale = gamma / jnp.sqrt(var + eps)
        w_folded = w * scale[:, None]                    # BN scale into weight
        b_folded = (beta - scale * mean)[:, None]        # (Cout, 1) shift
        return w_folded, b_folded

    kb, kd = jax.random.split(key)
    wb, bb = conv_bn(kb)
    wd, bd = conv_bn(kd)
    return {"w_base": wb, "b_base": bb, "w_dla": wd, "b_dla": bd}


# ----------------------------------------------------------------------------- reference

def csa_reference(base_feat, dla_feat, params, second_stage_feat=None):
    """Pure-JAX reference for correctness checking."""
    wb, bb = params["w_base"], params["b_base"]
    wd, bd = params["w_dla"], params["b_dla"]
    yb = jnp.einsum("oc,nchw->nohw", wb, base_feat) + bb.reshape(1, -1, 1, 1)
    yd = jnp.einsum("oc,nchw->nohw", wd, dla_feat) + bd.reshape(1, -1, 1, 1)
    out = jnp.maximum(yb, 0.0) + jnp.maximum(yd, 0.0)
    if second_stage_feat is not None:
        out = out + second_stage_feat
    return out


# ----------------------------------------------------------------------------- main

if __name__ == "__main__":
    key = jax.random.PRNGKey(0)
    kp, k1, k2, k3 = jax.random.split(key, 4)

    # Small shapes consistent with the module: NCHW, in_channel=4, out_channel=32.
    N, Cin, Cout, H, W = 2, 4, 32, 16, 16
    base_feat = jax.random.normal(k1, (N, Cin, H, W), jnp.float32)
    dla_feat = jax.random.normal(k2, (N, Cin, H, W), jnp.float32)
    second_stage_feat = jax.random.normal(k3, (N, Cout, H, W), jnp.float32)

    params = make_csa_params(kp, Cin, Cout)

    out_with = cross_stage_aggregation(base_feat, dla_feat, params, second_stage_feat)
    out_without = cross_stage_aggregation(base_feat, dla_feat, params, None)
    out_with = jax.block_until_ready(out_with)
    out_without = jax.block_until_ready(out_without)

    ref_with = csa_reference(base_feat, dla_feat, params, second_stage_feat)
    ref_without = csa_reference(base_feat, dla_feat, params, None)

    assert out_with.shape == (N, Cout, H, W), out_with.shape
    assert out_without.shape == (N, Cout, H, W), out_without.shape
    assert bool(jnp.all(jnp.isfinite(out_with)))
    assert bool(jnp.allclose(out_with, ref_with, atol=1e-4, rtol=1e-4))
    assert bool(jnp.allclose(out_without, ref_without, atol=1e-4, rtol=1e-4))

    print("KERNEL_OK")
</pallas_src>

<mosaic_0001>
module attributes {stable_mosaic.version = 11 : i64} {
  func.func @_csa_kernel(%arg0: i32, %arg1: i32, %arg2: memref<1x4x256xf32, #tpu.memory_space<vmem>>, %arg3: memref<1x4x256xf32, #tpu.memory_space<vmem>>, %arg4: memref<1x32x256xf32, #tpu.memory_space<vmem>>, %arg5: memref<32x4xf32, #tpu.memory_space<vmem>>, %arg6: memref<32x1xf32, #tpu.memory_space<vmem>>, %arg7: memref<32x4xf32, #tpu.memory_space<vmem>>, %arg8: memref<32x1xf32, #tpu.memory_space<vmem>>, %arg9: memref<1x32x256xf32, #tpu.memory_space<vmem>>) attributes {dimension_semantics = [#tpu.dimension_semantics<parallel>, #tpu.dimension_semantics<parallel>], iteration_bounds = array<i64: 2, 1>, scalar_prefetch = 0 : i64, scratch_operands = 0 : i64, tpu.core_type = #tpu.core_type<tc>, window_params = [{transform_indices = @transform_0, window_bounds = array<i64: 1, 4, 256>}, {transform_indices = @transform_1, window_bounds = array<i64: 1, 4, 256>}, {transform_indices = @transform_2, window_bounds = array<i64: 1, 32, 256>}, {pipeline_mode = #tpu.pipeline_mode<synchronous>, transform_indices = @transform_3, window_bounds = array<i64: 32, 4>}, {pipeline_mode = #tpu.pipeline_mode<synchronous>, transform_indices = @transform_4, window_bounds = array<i64: 32, 1>}, {pipeline_mode = #tpu.pipeline_mode<synchronous>, transform_indices = @transform_5, window_bounds = array<i64: 32, 4>}, {pipeline_mode = #tpu.pipeline_mode<synchronous>, transform_indices = @transform_6, window_bounds = array<i64: 32, 1>}, {transform_indices = @transform_7, window_bounds = array<i64: 1, 32, 256>}]} {
    %c0 = arith.constant 0 : index
    %c0_0 = arith.constant 0 : index
    %c0_1 = arith.constant 0 : index
    %0 = vector.load %arg2[%c0, %c0_0, %c0_1] : memref<1x4x256xf32, #tpu.memory_space<vmem>>, vector<1x4x256xf32>
    %1 = vector.shape_cast %0 : vector<1x4x256xf32> to vector<4x256xf32>
    %c0_2 = arith.constant 0 : index
    %c0_3 = arith.constant 0 : index
    %c0_4 = arith.constant 0 : index
    %2 = vector.load %arg3[%c0_2, %c0_3, %c0_4] : memref<1x4x256xf32, #tpu.memory_space<vmem>>, vector<1x4x256xf32>
    %3 = vector.shape_cast %2 : vector<1x4x256xf32> to vector<4x256xf32>
    %c0_5 = arith.constant 0 : index
    %c0_6 = arith.constant 0 : index
    %4 = vector.load %arg5[%c0_5, %c0_6] : memref<32x4xf32, #tpu.memory_space<vmem>>, vector<32x4xf32>
    %cst = arith.constant dense<0.000000e+00> : vector<32x256xf32>
    %5 = tpu.matmul %4, %1, %cst {dimension_numbers = #tpu.dot_dimension_numbers<[1], [0], [0], [1], [0, 0, 1, 1], [], []>} : vector<32x4xf32>, vector<4x256xf32>, vector<32x256xf32> -> vector<32x256xf32>
    %c0_7 = arith.constant 0 : index
    %c0_8 = arith.constant 0 : index
    %6 = vector.load %arg6[%c0_7, %c0_8] : memref<32x1xf32, #tpu.memory_space<vmem>>, vector<32x1xf32>
    %7 = vector.broadcast %6 : vector<32x1xf32> to vector<32x256xf32>
    %8 = arith.addf %5, %7 : vector<32x256xf32>
    %c0_9 = arith.constant 0 : index
    %c0_10 = arith.constant 0 : index
    %9 = vector.load %arg7[%c0_9, %c0_10] : memref<32x4xf32, #tpu.memory_space<vmem>>, vector<32x4xf32>
    %cst_11 = arith.constant dense<0.000000e+00> : vector<32x256xf32>
    %10 = tpu.matmul %9, %3, %cst_11 {dimension_numbers = #tpu.dot_dimension_numbers<[1], [0], [0], [1], [0, 0, 1, 1], [], []>} : vector<32x4xf32>, vector<4x256xf32>, vector<32x256xf32> -> vector<32x256xf32>
    %c0_12 = arith.constant 0 : index
    %c0_13 = arith.constant 0 : index
    %11 = vector.load %arg8[%c0_12, %c0_13] : memref<32x1xf32, #tpu.memory_space<vmem>>, vector<32x1xf32>
    %12 = vector.broadcast %11 : vector<32x1xf32> to vector<32x256xf32>
    %13 = arith.addf %10, %12 : vector<32x256xf32>
    %cst_14 = arith.constant 0.000000e+00 : f32
    %14 = vector.broadcast %cst_14 : f32 to vector<32x256xf32>
    %15 = arith.maximumf %8, %14 : vector<32x256xf32>
    %cst_15 = arith.constant 0.000000e+00 : f32
    %16 = vector.broadcast %cst_15 : f32 to vector<32x256xf32>
    %17 = arith.maximumf %13, %16 : vector<32x256xf32>
    %18 = arith.addf %15, %17 : vector<32x256xf32>
    %c0_16 = arith.constant 0 : index
    %c0_17 = arith.constant 0 : index
    %c0_18 = arith.constant 0 : index
    %19 = vector.load %arg4[%c0_16, %c0_17, %c0_18] : memref<1x32x256xf32, #tpu.memory_space<vmem>>, vector<1x32x256xf32>
    %20 = vector.shape_cast %19 : vector<1x32x256xf32> to vector<32x256xf32>
    %21 = arith.addf %18, %20 : vector<32x256xf32>
    %c0_19 = arith.constant 0 : index
    %c0_20 = arith.constant 0 : index
    %c0_21 = arith.constant 0 : index
    %22 = vector.load %arg9[%c0_19, %c0_20, %c0_21] : memref<1x32x256xf32, #tpu.memory_space<vmem>>, vector<1x32x256xf32>
    %23 = vector.shape_cast %22 : vector<1x32x256xf32> to vector<32x256xf32>
    %24 = vector.shape_cast %21 : vector<32x256xf32> to vector<1x32x256xf32>
    tpu.vector_store %arg9[%c0_19, %c0_20, %c0_21], %24 {strides = array<i32>} : memref<1x32x256xf32, #tpu.memory_space<vmem>>, vector<1x32x256xf32>,
    return
  }
  func.func @transform_0(%arg0: i32, %arg1: i32) -> (i32, i32, i32) {
    %c0_i32 = arith.constant 0 : i32
    %c0_i32_0 = arith.constant 0 : i32
    return %arg0, %c0_i32, %arg1 : i32, i32, i32
  }
  func.func @transform_1(%arg0: i32, %arg1: i32) -> (i32, i32, i32) {
    %c0_i32 = arith.constant 0 : i32
    %c0_i32_0 = arith.constant 0 : i32
    return %arg0, %c0_i32, %arg1 : i32, i32, i32
  }
  func.func @transform_2(%arg0: i32, %arg1: i32) -> (i32, i32, i32) {
    %c0_i32 = arith.constant 0 : i32
    %c0_i32_0 = arith.constant 0 : i32
    return %arg0, %c0_i32, %arg1 : i32, i32, i32
  }
  func.func @transform_3(%arg0: i32, %arg1: i32) -> (i32, i32) {
    %c0_i32 = arith.constant 0 : i32
    %c0_i32_0 = arith.constant 0 : i32
    %c0_i32_1 = arith.constant 0 : i32
    return %c0_i32, %c0_i32_0 : i32, i32
  }
  func.func @transform_4(%arg0: i32, %arg1: i32) -> (i32, i32) {
    %c0_i32 = arith.constant 0 : i32
    %c0_i32_0 = arith.constant 0 : i32
    %c0_i32_1 = arith.constant 0 : i32
    return %c0_i32, %c0_i32_0 : i32, i32
  }
  func.func @transform_5(%arg0: i32, %arg1: i32) -> (i32, i32) {
    %c0_i32 = arith.constant 0 : i32
    %c0_i32_0 = arith.constant 0 : i32
    %c0_i32_1 = arith.constant 0 : i32
    return %c0_i32, %c0_i32_0 : i32, i32
  }
  func.func @transform_6(%arg0: i32, %arg1: i32) -> (i32, i32) {
    %c0_i32 = arith.constant 0 : i32
    %c0_i32_0 = arith.constant 0 : i32
    %c0_i32_1 = arith.constant 0 : i32
    return %c0_i32, %c0_i32_0 : i32, i32
  }
  func.func @transform_7(%arg0: i32, %arg1: i32) -> (i32, i32, i32) {
    %c0_i32 = arith.constant 0 : i32
    %c0_i32_0 = arith.constant 0 : i32
    return %arg0, %c0_i32, %arg1 : i32, i32, i32
  }
}

</mosaic_0001>

<llo_original>
// kernel: tpu_custom_call.1
$region0: #{tpu_custom_call.1}
  #allocation0 [shape = 'u32[]', space=smem, size = 0x4, offset = 0x4, fixed_abs, tag = 'smem constant byte address 0x4 - core index']
  #allocation1 [shape = 'u32[144,128]{1,0:T(1,128)}', space=vmem, size = 0x12000, scoped, tag = 'internal scratch']
  %s0 = inlined_call_operand.vmem [shape: f32[2,4,256], index: 0, kind: input, shape index: {}]
  %s1 = inlined_call_operand.hbm [shape: f32[2,4,256], index: 1, kind: input, shape index: {}]
  %s2 = inlined_call_operand.vmem [shape: f32[2,32,256], index: 2, kind: input, shape index: {}]
  %s3 = inlined_call_operand.vmem [shape: f32[32,4], index: 3, kind: input, shape index: {}]
  %s4 = inlined_call_operand.vmem [shape: f32[32,1], index: 4, kind: input, shape index: {}]
  %s5 = inlined_call_operand.vmem [shape: f32[32,4], index: 5, kind: input, shape index: {}]
  %s6 = inlined_call_operand.vmem [shape: f32[32,1], index: 6, kind: input, shape index: {}]
  %s7 = inlined_call_operand.hbm [shape: f32[2,32,256], index: 7, kind: output, shape index: {}]
  %s8 = sld [smem:[#allocation0]]
  $region65: #{tpu_custom_call.1} parent=0
    _
  %s10 = ssub.s32 1, %s8
  %s11 = scalar_select 0, %s10, %s8
  $region1: #{tpu_custom_call.1} parent=0
    #allocation2 [shape = 'u8[8192]{0}', space=vmem, size = 0x2000, scoped, tag = 'input window, operand 1']
    #allocation3 [shape = 's32[2]{0}', space=sflag, size = 0x8, scoped, tag = 'scoped memory for tpu_custom_call.1']
    #allocation4 [shape = 's32[2]{0}', space=sflag, size = 0x8, scoped, tag = 'scoped memory for tpu_custom_call.1']
    #allocation5 [shape = 'u8[65536]{0}', space=vmem, size = 0x10000, scoped, tag = 'output window, operand 0']
    %12 = vsyncpa [#allocation3], 0
    %s13 = scalar_lea.sflag [#allocation3], 1
    %14 = vsyncpa %s13, 0
    %15 = vsyncpa [#allocation4], 0
    %s16 = scalar_lea.sflag [#allocation4], 1
    %17 = vsyncpa %s16, 0
    loop: start=0, step=1, limit=4
    $region2: #{tpu_custom_call.1} parent=1 // loop_pre_header
      _
    $region3: #{tpu_custom_call.1} parent=1 // loop_header
      %s19 = sphi 0, %s23
      %p20 = scmp.ge.s32.totalorder %s19, 4
      %s26 = sphi 0, %s38
      %s27 = sphi 0, %s34
      %s28 = sphi 0, %s26
      %s29 = sphi 0, %s27
      %s30 = sphi 0, %s28
      %s31 = sphi 0, %s29
      %s43 = sphi 0, %s45
      %s46 = sphi 0, %s43
      %s47 = sphi 0, %s46
      %s63 = sphi 0, %s47
      %s71 = sphi 0, %s73
      %s74 = sphi 0, %s71
      %s75 = sphi 0, %s74
      %s91 = sphi 0, %s75
      %s99 = sphi 0, %s101
      %s102 = sphi 0, %s99
      %s103 = sphi 0, %s102
      %s119 = sphi 0, %s103
      %s123 = sphi 0, %s123
      %s125 = sphi 0, %s123
      %s126 = sphi 0, %s125
      %s140 = sphi 0, %s126
      %s144 = sphi 0, %s144
      %s146 = sphi 0, %s144
      %s147 = sphi 0, %s146
      %s161 = sphi 0, %s147
      %s165 = sphi 0, %s165
      %s167 = sphi 0, %s165
      %s168 = sphi 0, %s167
      %s182 = sphi 0, %s168
      %s186 = sphi 0, %s186
      %s188 = sphi 0, %s186
      %s189 = sphi 0, %s188
      %s203 = sphi 0, %s189
      %s211 = sphi 0, %s213
      %s214 = sphi 0, %s211
      %s215 = sphi 0, %s214
      %s231 = sphi 0, %s215
    $region4: #{tpu_custom_call.1} parent=1 // loop_header_branch
      %22 = sbr.rel (%p20) target = $region8
    $region5: #{tpu_custom_call.1} parent=1 // loop_body
      %s24 = ssub.s32 %s19, 1
      %s25 = ssub.s32 %s19, 2
      %s32 = sadd.s32 1, %s27
      %p33 = scmp.ge.s32.totalorder %s32, 1
      %s34 = scalar_select %p33, 0, %s32
      %s35 = sadd.s32 1, %s26
      %s36 = scalar_select %p33, %s35, %s26
      %p37 = scmp.ge.s32.totalorder %s36, 2
      %s38 = scalar_select %p37, 0, %s36
      %s39 = ssub.s32 %s26, %s38
      %s40 = ssub.s32 %s27, %s34
      %s41 = sor.u32 %s39, %s40
      %p42 = scmp.eq.s32.totalorder %s41, 0
      %s44 = sadd.s32 %s43, 1
      %s45 = scalar_select %p42, %s43, %s44
      %p48 = pneg %p42
      %p49 = scmp.eq.s32.totalorder %s19, 1
      %p50 = por %p48, %p49
      %p51 = scmp.ne.s32.totalorder %s43, %s46
      %p52 = scmp.eq.s32.totalorder %s19, 0
      %p53 = por %p51, %p52
      %p54 = scmp.ne.s32.totalorder %s43, %s46
      %p55 = scmp.eq.s32.totalorder %s24, 1
      %p56 = por %p54, %p55
      %p57 = scmp.ne.s32.totalorder %s46, %s47
      %p58 = scmp.eq.s32.totalorder %s24, 0
      %p59 = por %p57, %p58
      %p60 = scmp.ne.s32.totalorder %s46, %s47
      %p61 = scmp.eq.s32.totalorder %s25, 1
      %p62 = por %p60, %p61
      %p64 = scmp.ne.s32.totalorder %s47, %s63
      %p65 = scmp.eq.s32.totalorder %s25, 0
      %p66 = por %p64, %p65
      %s67 = ssub.s32 %s26, %s38
      %s68 = ssub.s32 %s27, %s34
      %s69 = sor.u32 %s67, %s68
      %p70 = scmp.eq.s32.totalorder %s69, 0
      %s72 = sadd.s32 %s71, 1
      %s73 = scalar_select %p70, %s71, %s72
      %p76 = pneg %p70
      %p77 = scmp.eq.s32.totalorder %s19, 1
      %p78 = por %p76, %p77
      %p79 = scmp.ne.s32.totalorder %s71, %s74
      %p80 = scmp.eq.s32.totalorder %s19, 0
      %p81 = por %p79, %p80
      %p82 = scmp.ne.s32.totalorder %s71, %s74
      %p83 = scmp.eq.s32.totalorder %s24, 1
      %p84 = por %p82, %p83
      %p85 = scmp.ne.s32.totalorder %s74, %s75
      %p86 = scmp.eq.s32.totalorder %s24, 0
      %p87 = por %p85, %p86
      %p88 = scmp.ne.s32.totalorder %s74, %s75
      %p89 = scmp.eq.s32.totalorder %s25, 1
      %p90 = por %p88, %p89
      %p92 = scmp.ne.s32.totalorder %s75, %s91
      %p93 = scmp.eq.s32.totalorder %s25, 0
      %p94 = por %p92, %p93
      %s95 = ssub.s32 %s26, %s38
      %s96 = ssub.s32 %s27, %s34
      %s97 = sor.u32 %s95, %s96
      %p98 = scmp.eq.s32.totalorder %s97, 0
      %s100 = sadd.s32 %s99, 1
      %s101 = scalar_select %p98, %s99, %s100
      %p104 = pneg %p98
      %p105 = scmp.eq.s32.totalorder %s19, 1
      %p106 = por %p104, %p105
      %p107 = scmp.ne.s32.totalorder %s99, %s102
      %p108 = scmp.eq.s32.totalorder %s19, 0
      %p109 = por %p107, %p108
      %p110 = scmp.ne.s32.totalorder %s99, %s102
      %p111 = scmp.eq.s32.totalorder %s24, 1
      %p112 = por %p110, %p111
      %p113 = scmp.ne.s32.totalorder %s102, %s103
      %p114 = scmp.eq.s32.totalorder %s24, 0
      %p115 = por %p113, %p114
      %p116 = scmp.ne.s32.totalorder %s102, %s103
      %p117 = scmp.eq.s32.totalorder %s25, 1
      %p118 = por %p116, %p117
      %p120 = scmp.ne.s32.totalorder %s103, %s119
      %p121 = scmp.eq.s32.totalorder %s25, 0
      %p122 = por %p120, %p121
      %s124 = sadd.s32 %s123, 1
      %p127 = scmp.eq.s32.totalorder %s19, 1
      %p128 = scmp.ne.s32.totalorder %s123, %s125
      %p129 = scmp.eq.s32.totalorder %s19, 0
      %p130 = por %p128, %p129
      %p131 = scmp.ne.s32.totalorder %s123, %s125
      %p132 = scmp.eq.s32.totalorder %s24, 1
      %p133 = por %p131, %p132
      %p134 = scmp.ne.s32.totalorder %s125, %s126
      %p135 = scmp.eq.s32.totalorder %s24, 0
      %p136 = por %p134, %p135
      %p137 = scmp.ne.s32.totalorder %s125, %s126
      %p138 = scmp.eq.s32.totalorder %s25, 1
      %p139 = por %p137, %p138
      %p141 = scmp.ne.s32.totalorder %s126, %s140
      %p142 = scmp.eq.s32.totalorder %s25, 0
      %p143 = por %p141, %p142
      %s145 = sadd.s32 %s144, 1
      %p148 = scmp.eq.s32.totalorder %s19, 1
      %p149 = scmp.ne.s32.totalorder %s144, %s146
      %p150 = scmp.eq.s32.totalorder %s19, 0
      %p151 = por %p149, %p150
      %p152 = scmp.ne.s32.totalorder %s144, %s146
      %p153 = scmp.eq.s32.totalorder %s24, 1
      %p154 = por %p152, %p153
      %p155 = scmp.ne.s32.totalorder %s146, %s147
      %p156 = scmp.eq.s32.totalorder %s24, 0
      %p157 = por %p155, %p156
      %p158 = scmp.ne.s32.totalorder %s146, %s147
      %p159 = scmp.eq.s32.totalorder %s25, 1
      %p160 = por %p158, %p159
      %p162 = scmp.ne.s32.totalorder %s147, %s161
      %p163 = scmp.eq.s32.totalorder %s25, 0
      %p164 = por %p162, %p163
      %s166 = sadd.s32 %s165, 1
      %p169 = scmp.eq.s32.totalorder %s19, 1
      %p170 = scmp.ne.s32.totalorder %s165, %s167
      %p171 = scmp.eq.s32.totalorder %s19, 0
      %p172 = por %p170, %p171
      %p173 = scmp.ne.s32.totalorder %s165, %s167
      %p174 = scmp.eq.s32.totalorder %s24, 1
      %p175 = por %p173, %p174
      %p176 = scmp.ne.s32.totalorder %s167, %s168
      %p177 = scmp.eq.s32.totalorder %s24, 0
      %p178 = por %p176, %p177
      %p179 = scmp.ne.s32.totalorder %s167, %s168
      %p180 = scmp.eq.s32.totalorder %s25, 1
      %p181 = por %p179, %p180
      %p183 = scmp.ne.s32.totalorder %s168, %s182
      %p184 = scmp.eq.s32.totalorder %s25, 0
      %p185 = por %p183, %p184
      %s187 = sadd.s32 %s186, 1
      %p190 = scmp.eq.s32.totalorder %s19, 1
      %p191 = scmp.ne.s32.totalorder %s186, %s188
      %p192 = scmp.eq.s32.totalorder %s19, 0
      %p193 = por %p191, %p192
      %p194 = scmp.ne.s32.totalorder %s186, %s188
      %p195 = scmp.eq.s32.totalorder %s24, 1
      %p196 = por %p194, %p195
      %p197 = scmp.ne.s32.totalorder %s188, %s189
      %p198 = scmp.eq.s32.totalorder %s24, 0
      %p199 = por %p197, %p198
      %p200 = scmp.ne.s32.totalorder %s188, %s189
      %p201 = scmp.eq.s32.totalorder %s25, 1
      %p202 = por %p200, %p201
      %p204 = scmp.ne.s32.totalorder %s189, %s203
      %p205 = scmp.eq.s32.totalorder %s25, 0
      %p206 = por %p204, %p205
      %s207 = ssub.s32 %s26, %s38
      %s208 = ssub.s32 %s27, %s34
      %s209 = sor.u32 %s207, %s208
      %p210 = scmp.eq.s32.totalorder %s209, 0
      %s212 = sadd.s32 %s211, 1
      %s213 = scalar_select %p210, %s211, %s212
      %p216 = pneg %p210
      %p217 = scmp.eq.s32.totalorder %s19, 1
      %p218 = por %p216, %p217
      %p219 = scmp.ne.s32.totalorder %s211, %s214
      %p220 = scmp.eq.s32.totalorder %s19, 0
      %p221 = por %p219, %p220
      %p222 = scmp.ne.s32.totalorder %s211, %s214
      %p223 = scmp.eq.s32.totalorder %s24, 1
      %p224 = por %p222, %p223
      %p225 = scmp.ne.s32.totalorder %s214, %s215
      %p226 = scmp.eq.s32.totalorder %s24, 0
      %p227 = por %p225, %p226
      %p228 = scmp.ne.s32.totalorder %s214, %s215
      %p229 = scmp.eq.s32.totalorder %s25, 1
      %p230 = por %p228, %p229
      %p232 = scmp.ne.s32.totalorder %s215, %s231
      %p233 = scmp.eq.s32.totalorder %s25, 0
      %p234 = por %p232, %p233
      %p235 = scmp.le.s32.totalorder 1, %s19
      %p236 = scmp.lt.s32.totalorder %s19, 3
      %p237 = pnand %p235, %p236
      %p238 = pneg %p237
      // Predicated region
      $region9: #{tpu_custom_call.1} parent=5 // pred_check
        _
      $region10: #{tpu_custom_call.1} parent=5 // pred_check_branch
        %240 = sbr.rel (%p237) target = $region12
      $region11: #{tpu_custom_call.1} parent=5 // pred_region
        %s241 = ssub.s32 %s19, 1
        // Predicated region
        $region13: #{tpu_custom_call.1} parent=11 // pred_check
          %p242 = pneg %p136
        $region14: #{tpu_custom_call.1} parent=11 // pred_check_branch
          %244 = sbr.rel (%p242) target = $region16
        $region15: #{tpu_custom_call.1} parent=11 // pred_region
          _
        $region16: #{tpu_custom_call.1} parent=11 // pred_fallthru
          _
        // Predicated region
        $region17: #{tpu_custom_call.1} parent=11 // pred_check
          %p245 = pneg %p157
        $region18: #{tpu_custom_call.1} parent=11 // pred_check_branch
          %247 = sbr.rel (%p245) target = $region20
        $region19: #{tpu_custom_call.1} parent=11 // pred_region
          _
        $region20: #{tpu_custom_call.1} parent=11 // pred_fallthru
          _
        // Predicated region
        $region21: #{tpu_custom_call.1} parent=11 // pred_check
          %p248 = pneg %p178
        $region22: #{tpu_custom_call.1} parent=11 // pred_check_branch
          %250 = sbr.rel (%p248) target = $region24
        $region23: #{tpu_custom_call.1} parent=11 // pred_region
          _
        $region24: #{tpu_custom_call.1} parent=11 // pred_fallthru
          _
        // Predicated region
        $region25: #{tpu_custom_call.1} parent=11 // pred_check
          %p251 = pneg %p199
        $region26: #{tpu_custom_call.1} parent=11 // pred_check_branch
          %253 = sbr.rel (%p251) target = $region28
        $region27: #{tpu_custom_call.1} parent=11 // pred_region
          _
        $region28: #{tpu_custom_call.1} parent=11 // pred_fallthru
          _
      $region12: #{tpu_custom_call.1} parent=5 // pred_fallthru
        _
      %p254 = scmp.lt.s32.totalorder %s19, 2
      // Predicated region
      $region29: #{tpu_custom_call.1} parent=5 // pred_check
        %p255 = pneg %p254
      $region30: #{tpu_custom_call.1} parent=5 // pred_check_branch
        %257 = sbr.rel (%p255) target = $region32
      $region31: #{tpu_custom_call.1} parent=5 // pred_region
        // Predicated region
        $region33: #{tpu_custom_call.1} parent=31 // pred_check
          %p258 = pneg %p53
        $region34: #{tpu_custom_call.1} parent=31 // pred_check_branch
          %260 = sbr.rel (%p258) target = $region36
        $region35: #{tpu_custom_call.1} parent=31 // pred_region
          %s261 = smul.u32 2, %s27
          %p262 = scmp.lt.s32.totalorder %s26, 1
          %s263 = scalar_select %p262, %s26, 1
          %p264 = scmp.lt.s32.totalorder %s261, 1
          %s265 = scalar_select %p264, %s261, 1
          %s266 = smul.addr %s263, 2
          %s267 = sadd.s32 %s265, %s266
          %s268 = smul.addr %s267, 4
          %s269 = scalar_lea.vmem %s0, %s268
          %s270 = smul.u32 2, %s27
        $region36: #{tpu_custom_call.1} parent=31 // pred_fallthru
          _
        // Predicated region
        $region37: #{tpu_custom_call.1} parent=31 // pred_check
          %p271 = pneg %p81
        $region38: #{tpu_custom_call.1} parent=31 // pred_check_branch
          %273 = sbr.rel (%p271) target = $region40
        $region39: #{tpu_custom_call.1} parent=31 // pred_region
          %s274 = sand.u32 %s71, 1
          %s275 = scalar_lea.sflag [#allocation3], %s274
          %s276 = sand.u32 %s71, 1
          %s277 = smul.addr %s276, 8
          %s278 = scalar_lea.vmem [#allocation2], %s277
          %s279 = smul.u32 2, %s27
          %s281 = ssub.s32 128, 128
          %282 = vsyncadd %s275, %s281
          %s283 = smul.addr %s26, 2
          %s284 = sadd.s32 %s279, %s283
          %s285 = smul.addr %s284, 64
          %s286 = scalar_lea.hbm %s1, %s285
          %s288 = sshll.u32 %s278, 4
          %s289 = int_to_ptr.vmem [resolvable:$true] %s288
          %291 = dma.hbm_to_vmem [thread:$0]  %s286, 128, %s289, %s275
        $region40: #{tpu_custom_call.1} parent=31 // pred_fallthru
          _
        // Predicated region
        $region41: #{tpu_custom_call.1} parent=31 // pred_check
          %p292 = pneg %p109
        $region42: #{tpu_custom_call.1} parent=31 // pred_check_branch
          %294 = sbr.rel (%p292) target = $region44
        $region43: #{tpu_custom_call.1} parent=31 // pred_region
          %s295 = smul.u32 2, %s27
          %p296 = scmp.lt.s32.totalorder %s26, 1
          %s297 = scalar_select %p296, %s26, 1
          %p298 = scmp.lt.s32.totalorder %s295, 1
          %s299 = scalar_select %p298, %s295, 1
          %s300 = smul.addr %s297, 8
          %s301 = sadd.s32 %s299, %s300
          %s302 = smul.addr %s301, 8
          %s303 = scalar_lea.vmem %s2, %s302
          %s304 = smul.u32 2, %s27
        $region44: #{tpu_custom_call.1} parent=31 // pred_fallthru
          _
      $region32: #{tpu_custom_call.1} parent=5 // pred_fallthru
        _
      %p305 = scmp.le.s32.totalorder 1, %s19
      %p306 = scmp.lt.s32.totalorder %s19, 3
      %p307 = pnand %p305, %p306
      %p308 = pneg %p307
      // Predicated region
      $region45: #{tpu_custom_call.1} parent=5 // pred_check
        _
      $region46: #{tpu_custom_call.1} parent=5 // pred_check_branch
        %310 = sbr.rel (%p307) target = $region48
      $region47: #{tpu_custom_call.1} parent=5 // pred_region
        %s311 = ssub.s32 %s19, 1
        %s312 = sand.u32 %s74, 1
        %s313 = scalar_lea.sflag [#allocation3], %s312
        %s314 = sand.u32 %s74, 1
        %s315 = smul.addr %s314, 8
        %s316 = scalar_lea.vmem [#allocation2], %s315
        // Predicated region
        $region49: #{tpu_custom_call.1} parent=47 // pred_check
          %p317 = pneg %p87
        $region50: #{tpu_custom_call.1} parent=47 // pred_check_branch
          %319 = sbr.rel (%p317) target = $region52
        $region51: #{tpu_custom_call.1} parent=47 // pred_region
          %320 = dma.done %s313, 128
        $region52: #{tpu_custom_call.1} parent=47 // pred_fallthru
          _
        %s321 = smul.u32 2, %s29
        %p322 = scmp.lt.s32.totalorder %s28, 1
        %s323 = scalar_select %p322, %s28, 1
        %p324 = scmp.lt.s32.totalorder %s321, 1
        %s325 = scalar_select %p324, %s321, 1
        %s326 = smul.addr %s323, 2
        %s327 = sadd.s32 %s325, %s326
        %s328 = smul.addr %s327, 4
        %s329 = scalar_lea.vmem %s0, %s328
        %p330 = pneg %p59
        %p331 = pneg %p56
        %s332 = sand.u32 %s74, 1
        %s333 = scalar_lea.sflag [#allocation3], %s332
        %s334 = sand.u32 %s74, 1
        %s335 = smul.addr %s334, 8
        %s336 = scalar_lea.vmem [#allocation2], %s335
        %p337 = pneg %p87
        %p338 = pneg %p84
        %s339 = smul.u32 2, %s29
        %p340 = scmp.lt.s32.totalorder %s28, 1
        %s341 = scalar_select %p340, %s28, 1
        %p342 = scmp.lt.s32.totalorder %s339, 1
        %s343 = scalar_select %p342, %s339, 1
        %s344 = smul.addr %s341, 8
        %s345 = sadd.s32 %s343, %s344
        %s346 = smul.addr %s345, 8
        %s347 = scalar_lea.vmem %s2, %s346
        %p348 = pneg %p115
        %p349 = pneg %p112
        %p350 = pneg %p136
        %p351 = pneg %p133
        %p352 = pneg %p157
        %p353 = pneg %p154
        %p354 = pneg %p178
        %p355 = pneg %p175
        %p356 = pneg %p199
        %p357 = pneg %p196
        %p358 = pneg %p227
        %p359 = pneg %p224
        %s360 = sand.u32 %s214, 1
        %s361 = scalar_lea.sflag [#allocation4], %s360
        %s362 = sand.u32 %s214, 1
        %s363 = smul.addr %s362, 64
        %s364 = scalar_lea.vmem [#allocation5], %s363
        %s365 = smul.u32 2, %s29
        %p366 = scmp.lt.s32.totalorder %s28, 1
        %s367 = scalar_select %p366, %s28, 1
        %p368 = scmp.lt.s32.totalorder %s365, 1
        %s369 = scalar_select %p368, %s365, 1
        %s370 = smul.addr %s367, 2
        %s371 = sadd.s32 %s369, %s370
        %s372 = smul.addr %s371, 4
        %s373 = scalar_lea.vmem %s0, %s372
        %s374 = smul.u32 2, %s29
        %s375 = smul.u32 2, %s29
        %s376 = smul.u32 2, %s29
        %p377 = scmp.lt.s32.totalorder %s28, 1
        %s378 = scalar_select %p377, %s28, 1
        %p379 = scmp.lt.s32.totalorder %s376, 1
        %s380 = scalar_select %p379, %s376, 1
        %s381 = smul.addr %s378, 8
        %s382 = sadd.s32 %s380, %s381
        %s383 = smul.addr %s382, 8
        %s384 = scalar_lea.vmem %s2, %s383
        %s385 = smul.u32 2, %s29
        %s386 = smul.u32 2, %s29
        %v387 = vld [vmem:[%s373] sm:$0xff]
        %v388 = vld [vmem:[%s316] sm:$0xff]
        %v389 = vld [vmem:[%s3] sm:$0xff]
        %v390 = vld [vmem:[%s3 + $0x8] sm:$0xff]
        %v391 = vld [vmem:[%s3 + $0x10] sm:$0xff]
        %v392 = vld [vmem:[%s3 + $0x18] sm:$0xff]
        %v393 = vld [vmem:[%s4] sm:$0xff]
        %v394 = vld [vmem:[%s4 + $0x8] sm:$0xff]
        %v395 = vld [vmem:[%s4 + $0x10] sm:$0xff]
        %v396 = vld [vmem:[%s4 + $0x18] sm:$0xff]
        %398 = vset.pattern.permute.xlu0 0
        %399 = vperm.xlu0 %398, %v393
        %v400 = vpop.permute.xlu0 %399
        %403 = vset.pattern.permute.xlu0 0
        %404 = vperm.xlu0 %403, %v394
        %v405 = vpop.permute.xlu0 %404
        %408 = vset.pattern.permute.xlu0 0
        %409 = vperm.xlu0 %408, %v395
        %v410 = vpop.permute.xlu0 %409
        %413 = vset.pattern.permute.xlu0 0
        %414 = vperm.xlu0 %413, %v396
        %v415 = vpop.permute.xlu0 %414
        %v418 = vcombine.high %v387, %v387
        %vm419 = vcmask 31744
        %v421 = vsel %vm419, %v389, 0
        %v424 = vsel %vm419, %v390, 0
        %v427 = vsel %vm419, %v391, 0
        %v430 = vsel %vm419, %v392, 0
        %vm432 = vcmask 1043456
        %v433 = vsel %vm432, %v387, 0
        %v435 = vsel %vm432, %v418, 0
        %437 = vmatprep.subr.mxu0 %v435
        %438 = vmatpush1.msra.mxu0 %v433
        %439 = vmatprep.subr.mxu0 0.0
        %440 = vmatpush1.msra.mxu0 0.0
        %441 = vmatprep.subr.mxu0 0.0
        %442 = vmatpush1.msra.mxu0 0.0
        %443 = vmatprep.subr.mxu0 0.0
        %444 = vmatpush1.msra.mxu0 0.0
        %445 = vmatprep.subr.mxu0 0.0
        %446 = vmatpush1.msra.mxu0 0.0
        %447 = vmatprep.subr.mxu0 0.0
        %448 = vmatpush1.msra.mxu0 0.0
        %449 = vmatprep.subr.mxu0 0.0
        %450 = vmatpush1.msra.mxu0 0.0
        %451 = vmatprep.subr.mxu0 0.0
        %452 = vmatpush1.msra.mxu0 0.0
        %453 = vmatprep.subr.mxu0 0.0
        %454 = vmatpush1.msra.mxu0 0.0
        %455 = vmatprep.subr.mxu0 0.0
        %456 = vmatpush1.msra.mxu0 0.0
        %457 = vmatprep.subr.mxu0 0.0
        %458 = vmatpush1.msra.mxu0 0.0
        %459 = vmatprep.subr.mxu0 0.0
        %460 = vmatpush1.msra.mxu0 0.0
        %461 = vmatprep.subr.mxu0 0.0
        %462 = vmatpush1.msra.mxu0 0.0
        %463 = vmatprep.subr.mxu0 0.0
        %464 = vmatpush1.msra.mxu0 0.0
        %465 = vmatprep.subr.mxu0 0.0
        %466 = vmatpush1.msra.mxu0 0.0
        %467 = vmatprep.subr.mxu0 0.0
        %468 = vmatpush1.msra.mxu0 0.0
        %469 = vmatprep.subr.mxu0 0.0
        %470 = vmatpush1.msra.mxu0 0.0
        %471 = vmatprep.subr.mxu0 0.0
        %472 = vmatpush1.msra.mxu0 0.0
        %473 = vmatprep.subr.mxu0 0.0
        %474 = vmatpush1.msra.mxu0 0.0
        %475 = vmatprep.subr.mxu0 0.0
        %476 = vmatpush1.msra.mxu0 0.0
        %477 = vmatprep.subr.mxu0 0.0
        %478 = vmatpush1.msra.mxu0 0.0
        %479 = vmatprep.subr.mxu0 0.0
        %480 = vmatpush1.msra.mxu0 0.0
        %481 = vmatprep.subr.mxu0 0.0
        %482 = vmatpush1.msra.mxu0 0.0
        %483 = vmatprep.subr.mxu0 0.0
        %484 = vmatpush1.msra.mxu0 0.0
        %485 = vmatprep.subr.mxu0 0.0
        %486 = vmatpush1.msra.mxu0 0.0
        %487 = vmatprep.subr.mxu0 0.0
        %488 = vmatpush1.msra.mxu0 0.0
        %489 = vmatprep.subr.mxu0 0.0
        %490 = vmatpush1.msra.mxu0 0.0
        %491 = vmatprep.subr.mxu0 0.0
        %492 = vmatpush1.msra.mxu0 0.0
        %493 = vmatprep.subr.mxu0 0.0
        %494 = vmatpush1.msra.mxu0 0.0
        %495 = vmatprep.subr.mxu0 0.0
        %496 = vmatpush1.msra.mxu0 0.0
        %497 = vmatprep.subr.mxu0 0.0
        %498 = vmatpush1.msra.mxu0 0.0
        %499 = vmatprep.subr.mxu0 0.0
        %500 = vmatpush1.msra.mxu0 0.0
        %501 = vmatprep.mubr.f32.mxu0 0.0
        %502 = vmatmul.mubr.f32.gmra.mrb[0].mxu0 %v421
        %v503 = vpop.f32.mrb[0].mxu0
        %v504 = vadd.f32 %v400, %v503
        %v505 = vpop.f32.mrb[0].mxu0
        %v506 = vadd.f32 %v400, %v505
        %507 = vmatprep.mubr.f32.mxu0 0.0
        %508 = vmatmul.mubr.f32.gmra.mrb[0].mxu0 %v424
        %v509 = vpop.f32.mrb[0].mxu0
        %v510 = vadd.f32 %v405, %v509
        %v511 = vpop.f32.mrb[0].mxu0
        %v512 = vadd.f32 %v405, %v511
        %513 = vmatprep.mubr.f32.mxu0 0.0
        %514 = vmatmul.mubr.f32.gmra.mrb[0].mxu0 %v427
        %v515 = vpop.f32.mrb[0].mxu0
        %v516 = vadd.f32 %v410, %v515
        %v517 = vpop.f32.mrb[0].mxu0
        %v518 = vadd.f32 %v410, %v517
        %519 = vmatprep.mubr.f32.mxu0 0.0
        %520 = vmatmul.mubr.f32.gmra.mrb[0].mxu0 %v430
        %v521 = vpop.f32.mrb[0].mxu0
        %v522 = vadd.f32 %v415, %v521
        %v523 = vpop.f32.mrb[0].mxu0
        %v524 = vadd.f32 %v415, %v523
        %525 = vdwg.mxu0
        %v526 = vld [vmem:[%s5] sm:$0xff]
        %v527 = vld [vmem:[%s5 + $0x8] sm:$0xff]
        %v528 = vld [vmem:[%s5 + $0x10] sm:$0xff]
        %v529 = vld [vmem:[%s5 + $0x18] sm:$0xff]
        %v530 = vld [vmem:[%s6] sm:$0xff]
        %v531 = vld [vmem:[%s6 + $0x8] sm:$0xff]
        %v532 = vld [vmem:[%s6 + $0x10] sm:$0xff]
        %v533 = vld [vmem:[%s6 + $0x18] sm:$0xff]
        %535 = vset.pattern.permute.xlu0 0
        %536 = vperm.xlu0 %535, %v530
        %v537 = vpop.permute.xlu0 %536
        %540 = vset.pattern.permute.xlu0 0
        %541 = vperm.xlu0 %540, %v531
        %v542 = vpop.permute.xlu0 %541
        %545 = vset.pattern.permute.xlu0 0
        %546 = vperm.xlu0 %545, %v532
        %v547 = vpop.permute.xlu0 %546
        %550 = vset.pattern.permute.xlu0 0
        %551 = vperm.xlu0 %550, %v533
        %v552 = vpop.permute.xlu0 %551
        %v555 = vcombine.high %v388, %v388
        %v557 = vsel %vm419, %v526, 0
        %v560 = vsel %vm419, %v527, 0
        %v563 = vsel %vm419, %v528, 0
        %v566 = vsel %vm419, %v529, 0
        %v568 = vsel %vm432, %v388, 0
        %v570 = vsel %vm432, %v555, 0
        %572 = vmatprep.subr.mxu0 %v570
        %573 = vmatpush1.msra.mxu0 %v568
        %574 = vmatprep.subr.mxu0 0.0
        %575 = vmatpush1.msra.mxu0 0.0
        %576 = vmatprep.subr.mxu0 0.0
        %577 = vmatpush1.msra.mxu0 0.0
        %578 = vmatprep.subr.mxu0 0.0
        %579 = vmatpush1.msra.mxu0 0.0
        %580 = vmatprep.subr.mxu0 0.0
        %581 = vmatpush1.msra.mxu0 0.0
        %582 = vmatprep.subr.mxu0 0.0
        %583 = vmatpush1.msra.mxu0 0.0
        %584 = vmatprep.subr.mxu0 0.0
        %585 = vmatpush1.msra.mxu0 0.0
        %586 = vmatprep.subr.mxu0 0.0
        %587 = vmatpush1.msra.mxu0 0.0
        %588 = vmatprep.subr.mxu0 0.0
        %589 = vmatpush1.msra.mxu0 0.0
        %590 = vmatprep.subr.mxu0 0.0
        %591 = vmatpush1.msra.mxu0 0.0
        %592 = vmatprep.subr.mxu0 0.0
        %593 = vmatpush1.msra.mxu0 0.0
        %594 = vmatprep.subr.mxu0 0.0
        %595 = vmatpush1.msra.mxu0 0.0
        %596 = vmatprep.subr.mxu0 0.0
        %597 = vmatpush1.msra.mxu0 0.0
        %598 = vmatprep.subr.mxu0 0.0
        %599 = vmatpush1.msra.mxu0 0.0
        %600 = vmatprep.subr.mxu0 0.0
        %601 = vmatpush1.msra.mxu0 0.0
        %602 = vmatprep.subr.mxu0 0.0
        %603 = vmatpush1.msra.mxu0 0.0
        %604 = vmatprep.subr.mxu0 0.0
        %605 = vmatpush1.msra.mxu0 0.0
        %606 = vmatprep.subr.mxu0 0.0
        %607 = vmatpush1.msra.mxu0 0.0
        %608 = vmatprep.subr.mxu0 0.0
        %609 = vmatpush1.msra.mxu0 0.0
        %610 = vmatprep.subr.mxu0 0.0
        %611 = vmatpush1.msra.mxu0 0.0
        %612 = vmatprep.subr.mxu0 0.0
        %613 = vmatpush1.msra.mxu0 0.0
        %614 = vmatprep.subr.mxu0 0.0
        %615 = vmatpush1.msra.mxu0 0.0
        %616 = vmatprep.subr.mxu0 0.0
        %617 = vmatpush1.msra.mxu0 0.0
        %618 = vmatprep.subr.mxu0 0.0
        %619 = vmatpush1.msra.mxu0 0.0
        %620 = vmatprep.subr.mxu0 0.0
        %621 = vmatpush1.msra.mxu0 0.0
        %622 = vmatprep.subr.mxu0 0.0
        %623 = vmatpush1.msra.mxu0 0.0
        %624 = vmatprep.subr.mxu0 0.0
        %625 = vmatpush1.msra.mxu0 0.0
        %626 = vmatprep.subr.mxu0 0.0
        %627 = vmatpush1.msra.mxu0 0.0
        %628 = vmatprep.subr.mxu0 0.0
        %629 = vmatpush1.msra.mxu0 0.0
        %630 = vmatprep.subr.mxu0 0.0
        %631 = vmatpush1.msra.mxu0 0.0
        %632 = vmatprep.subr.mxu0 0.0
        %633 = vmatpush1.msra.mxu0 0.0
        %634 = vmatprep.subr.mxu0 0.0
        %635 = vmatpush1.msra.mxu0 0.0
        %636 = vmatprep.mubr.f32.mxu0 0.0
        %637 = vmatmul.mubr.f32.gmra.mrb[0].mxu0 %v557
        %v638 = vpop.f32.mrb[0].mxu0
        %v639 = vadd.f32 %v537, %v638
        %v640 = vpop.f32.mrb[0].mxu0
        %v641 = vadd.f32 %v537, %v640
        %642 = vmatprep.mubr.f32.mxu0 0.0
        %643 = vmatmul.mubr.f32.gmra.mrb[0].mxu0 %v560
        %v644 = vpop.f32.mrb[0].mxu0
        %v645 = vadd.f32 %v542, %v644
        %v646 = vpop.f32.mrb[0].mxu0
        %v647 = vadd.f32 %v542, %v646
        %648 = vmatprep.mubr.f32.mxu0 0.0
        %649 = vmatmul.mubr.f32.gmra.mrb[0].mxu0 %v563
        %v650 = vpop.f32.mrb[0].mxu0
        %v651 = vadd.f32 %v547, %v650
        %v652 = vpop.f32.mrb[0].mxu0
        %v653 = vadd.f32 %v547, %v652
        %654 = vmatprep.mubr.f32.mxu0 0.0
        %655 = vmatmul.mubr.f32.gmra.mrb[0].mxu0 %v566
        %v656 = vpop.f32.mrb[0].mxu0
        %v657 = vadd.f32 %v552, %v656
        %v658 = vpop.f32.mrb[0].mxu0
        %v659 = vadd.f32 %v552, %v658
        %660 = vdwg.mxu0
        %v661 = vmax.f32 %v504, 0.0
        %v662 = vmax.f32 %v506, 0.0
        %v663 = vmax.f32 %v510, 0.0
        %v664 = vmax.f32 %v512, 0.0
        %v665 = vmax.f32 %v516, 0.0
        %v666 = vmax.f32 %v518, 0.0
        %v667 = vmax.f32 %v522, 0.0
        %v668 = vmax.f32 %v524, 0.0
        %v669 = vmax.f32 %v639, 0.0
        %v670 = vmax.f32 %v641, 0.0
        %v671 = vmax.f32 %v645, 0.0
        %v672 = vmax.f32 %v647, 0.0
        %v673 = vmax.f32 %v651, 0.0
        %v674 = vmax.f32 %v653, 0.0
        %v675 = vmax.f32 %v657, 0.0
        %v676 = vmax.f32 %v659, 0.0
        %v677 = vadd.f32 %v661, %v669
        %v678 = vadd.f32 %v662, %v670
        %v679 = vadd.f32 %v663, %v671
        %v680 = vadd.f32 %v664, %v672
        %v681 = vadd.f32 %v665, %v673
        %v682 = vadd.f32 %v666, %v674
        %v683 = vadd.f32 %v667, %v675
        %v684 = vadd.f32 %v668, %v676
        %v685 = vld [vmem:[%s384] sm:$0xff]
        %v686 = vld [vmem:[%s384 + $0x8] sm:$0xff]
        %v687 = vld [vmem:[%s384 + $0x10] sm:$0xff]
        %v688 = vld [vmem:[%s384 + $0x18] sm:$0xff]
        %v689 = vld [vmem:[%s384 + $0x20] sm:$0xff]
        %v690 = vld [vmem:[%s384 + $0x28] sm:$0xff]
        %v691 = vld [vmem:[%s384 + $0x30] sm:$0xff]
        %v692 = vld [vmem:[%s384 + $0x38] sm:$0xff]
        %v693 = vadd.f32 %v677, %v685
        %v694 = vadd.f32 %v678, %v686
        %v695 = vadd.f32 %v679, %v687
        %v696 = vadd.f32 %v680, %v688
        %v697 = vadd.f32 %v681, %v689
        %v698 = vadd.f32 %v682, %v690
        %v699 = vadd.f32 %v683, %v691
        %v700 = vadd.f32 %v684, %v692
        %701 = vst [vmem:[%s364] sm:$0xff] %v693
        %702 = vst [vmem:[%s364 + $0x8] sm:$0xff] %v694
        %703 = vst [vmem:[%s364 + $0x10] sm:$0xff] %v695
        %704 = vst [vmem:[%s364 + $0x18] sm:$0xff] %v696
        %705 = vst [vmem:[%s364 + $0x20] sm:$0xff] %v697
        %706 = vst [vmem:[%s364 + $0x28] sm:$0xff] %v698
        %707 = vst [vmem:[%s364 + $0x30] sm:$0xff] %v699
        %708 = vst [vmem:[%s364 + $0x38] sm:$0xff] %v700
        %s709 = sand.u32 %s214, 1
        %s710 = scalar_lea.sflag [#allocation4], %s709
        %s711 = sand.u32 %s214, 1
        %s712 = smul.addr %s711, 64
        %s713 = scalar_lea.vmem [#allocation5], %s712
        // Predicated region
        $region53: #{tpu_custom_call.1} parent=47 // pred_check
          %p714 = pneg %p224
        $region54: #{tpu_custom_call.1} parent=47 // pred_check_branch
          %716 = sbr.rel (%p714) target = $region56
        $region55: #{tpu_custom_call.1} parent=47 // pred_region
          %s717 = smul.u32 2, %s29
          %s719 = ssub.s32 1024, 1024
          %720 = vsyncadd %s710, %s719
          %s721 = smul.addr %s28, 8
          %s722 = sadd.s32 %s717, %s721
          %s723 = smul.addr %s722, 128
          %s724 = scalar_lea.hbm %s7, %s723
          %s725 = sshll.u32 %s713, 4
          %s726 = int_to_ptr.vmem [resolvable:$true] %s725
          %731 = dma.vmem_to_hbm [thread:$0]  %s726, 1024, %s724, %s710, 256, 256, 16
        $region56: #{tpu_custom_call.1} parent=47 // pred_fallthru
          _
      $region48: #{tpu_custom_call.1} parent=5 // pred_fallthru
        _
      %p732 = scmp.le.s32.totalorder 2, %s19
      // Predicated region
      $region57: #{tpu_custom_call.1} parent=5 // pred_check
        %p733 = pneg %p732
      $region58: #{tpu_custom_call.1} parent=5 // pred_check_branch
        %735 = sbr.rel (%p733) target = $region60
      $region59: #{tpu_custom_call.1} parent=5 // pred_region
        %s736 = ssub.s32 %s19, 2
        // Predicated region
        $region61: #{tpu_custom_call.1} parent=59 // pred_check
          %p737 = pneg %p230
        $region62: #{tpu_custom_call.1} parent=59 // pred_check_branch
          %739 = sbr.rel (%p737) target = $region64
        $region63: #{tpu_custom_call.1} parent=59 // pred_region
          %s740 = sand.u32 %s215, 1
          %s741 = scalar_lea.sflag [#allocation4], %s740
          %s742 = sand.u32 %s215, 1
          %s743 = smul.addr %s742, 64
          %s744 = scalar_lea.vmem [#allocation5], %s743
          %745 = dma.done %s741, 1024
        $region64: #{tpu_custom_call.1} parent=59 // pred_fallthru
          _
      $region60: #{tpu_custom_call.1} parent=5 // pred_fallthru
        _
    $region6: #{tpu_custom_call.1} parent=1 // loop_footer
      %s23 = sadd.s32 1, %s19
    $region7: #{tpu_custom_call.1} parent=1 // loop_footer_branch
      %18 = sbr.rel target = $region3
    $region8: #{tpu_custom_call.1} parent=1 // loop_exit
      _
    %746 = vsyncpa [#allocation3], 1
    %s747 = scalar_lea.sflag [#allocation3], 1
    %748 = vsyncpa %s747, 1
    %749 = vsyncpa [#allocation4], 1
    %s750 = scalar_lea.sflag [#allocation4], 1
    %751 = vsyncpa %s750, 1

</llo_original>
